<compile_context>
chip_gen: v7x
topology: tpu7x:2x2x1
jax: 0.10.0
libtpu: 0.0.40
codegen_flags: <defaults>
</compile_context>

<pallas_src>
import math

import jax
import jax.numpy as jnp
from jax.experimental import pallas as pl
from jax.experimental.pallas import tpu as pltpu


def _round_up(n, m):
    return ((n + m - 1) // m) * m


def _tpu_vmem_capacity_bytes():
    try:
        return int(pltpu.get_tpu_info().vmem_capacity_bytes)
    except Exception:
        return 64 * 1024 * 1024  # conservative default (v7x per-core VMEM)


def _pick_q_tile(hw, cap):
    """Largest divisor of hw that is a multiple of 128 and <= cap."""
    cap = max(128, (min(cap, hw) // 128) * 128)
    for d in range(cap, 127, -128):
        if hw % d == 0:
            return d
    # TODO(synk): pad HW (e.g. 56*56=3136) to a multiple of 128 with masking instead
    #             of falling back to a single full-extent tile.
    return hw


# ---------------------------------------------------------------------------
# Kernel 1: packed phi | g | ones projection (1x1 conv over channels)
# ---------------------------------------------------------------------------
def nl_proj_kernel(x_ref, w_ref, b_ref, pg_ref):
    # x_ref: (1, C, TS) f32   w_ref: (R, C) bf16   b_ref: (R, 1) f32   pg_ref: (1, R, TS) bf16
    xs = x_ref[0].astype(jnp.bfloat16)
    p = jnp.dot(w_ref[...], xs, preferred_element_type=jnp.float32) + b_ref[...]
    pg_ref[0] = p.astype(jnp.bfloat16)


# ---------------------------------------------------------------------------
# Kernel 2: attention (embedded-gaussian) + W_z(+BN folded) + residual
# ---------------------------------------------------------------------------
def nl_attn_kernel(x_ref, pg_ref, w_th_ref, b_th_ref, wz_ref, bz_ref, z_ref):
    ci = w_th_ref.shape[1]                 # padded inter_channels
    xq = x_ref[0]                          # (C, TQ) f32 (kept f32 for the residual)

    # theta for this query tile in (TQ, Ci) orientation; bf16 MXU operands, f32 acc.
    th = jax.lax.dot_general(
        xq.astype(jnp.bfloat16), w_th_ref[...],
        (((0,), (0,)), ((), ())), preferred_element_type=jnp.float32)
    th = (th + b_th_ref[...]).astype(jnp.bfloat16)                     # (TQ, Ci)

    # logits f = theta @ phi : (TQ, Ci) x (Ci, HW) -> (TQ, HW), f32 accumulation.
    ph = pg_ref[0, :ci, :]                                             # (Ci, HW) bf16 view
    f = jnp.dot(th, ph, preferred_element_type=jnp.float32)

    # embedded-gaussian softmax, normalization deferred past the PV matmul.
    m = jnp.max(f, axis=1, keepdims=True)
    e = jnp.exp(f - m).astype(jnp.bfloat16)                            # (TQ, HW)

    # rows [0:Ci] = g projection, row Ci = constant ones -> the PV matmul also
    # produces the softmax denominator in (1, TQ) orientation (no extra reduction).
    g1 = pg_ref[0, ci:, :]                                             # (Ci+8, HW) bf16 view
    y1 = jax.lax.dot_general(g1, e, (((1,), (1,)), ((), ())),
                             preferred_element_type=jnp.float32)       # (Ci+8, TQ)
    inv = pl.reciprocal(y1[ci:ci + 1, :], approx=True)                 # (1, TQ)
    y = (y1[:ci, :] * inv).astype(jnp.bfloat16)                        # (Ci, TQ)

    # W_z (1x1 conv with eval-mode BatchNorm folded) + residual.
    z = jnp.dot(wz_ref[...], y, preferred_element_type=jnp.float32) + bz_ref[...] + xq
    z_ref[0] = z.astype(z_ref.dtype)


# ---------------------------------------------------------------------------
# Wrapper
# ---------------------------------------------------------------------------
def nl_forward(x, p, *, q_tile=None):
    B, C, H, W = x.shape
    HW = H * W
    Ci = p["w_theta"].shape[0]
    f32, bf16 = jnp.float32, jnp.bfloat16

    # Pad inter_channels: multiple of 8 for aligned sublane slicing; up to 128 when
    # small for MXU fill. Zero-padded rows/cols do not change the math.
    Ci_p = _round_up(Ci, 128) if Ci < 128 else _round_up(Ci, 8)
    R = 2 * Ci_p + 8                       # phi | g | ones-block rows

    x2 = x.reshape(B, C, HW)

    def pad_rows(w, rows):
        return jnp.zeros((rows, C), f32).at[:w.shape[0]].set(w.astype(f32))

    def pad_vec(b, rows):
        return jnp.zeros((rows,), f32).at[:b.shape[0]].set(b.astype(f32))

    # packed phi|g weights + a constant-one row (zero weight, bias 1.0).
    w_pack = jnp.concatenate(
        [pad_rows(p["w_phi"], Ci_p), pad_rows(p["w_g"], Ci_p), jnp.zeros((8, C), f32)],
        axis=0).astype(bf16)                                            # (R, C) bf16
    b_pack = jnp.concatenate(
        [pad_vec(p["b_phi"], Ci_p), pad_vec(p["b_g"], Ci_p),
         jnp.zeros((8,), f32).at[0].set(1.0)])[:, None]                 # (R, 1) f32

    # theta weight transposed (C, Ci_p) so theta lands in (TQ, Ci) orientation.
    w_th_t = pad_rows(p["w_theta"], Ci_p).T.astype(bf16)                # (C, Ci_p) bf16
    b_th = pad_vec(p["b_theta"], Ci_p)[None, :]                         # (1, Ci_p) f32

    # Fold eval-mode BatchNorm into W_z and its bias.
    scale = p["bn_gamma"] * jax.lax.rsqrt(p["bn_var"] + p["bn_eps"])    # (C,)
    w_z = jnp.zeros((C, Ci_p), f32).at[:, :Ci].set(
        scale[:, None] * p["w_z"]).astype(bf16)                         # (C, Ci_p) bf16
    b_z = (scale * (p["b_z"] - p["bn_mean"]) + p["bn_beta"])[:, None]   # (C, 1) f32

    # ---- generation-aware tiling / VMEM budget ----
    vmem_cap = _tpu_vmem_capacity_bytes()
    if vmem_cap >= 96 * 1024 * 1024:       # v5e / v6e: 128 MiB VMEM
        tile_cap, vmem_limit = 512, 100 * 1024 * 1024
    else:                                   # v7x: 64 MiB per-core VMEM
        tile_cap, vmem_limit = 256, 56 * 1024 * 1024
    vmem_limit = int(min(vmem_limit, max(vmem_cap - (8 << 20), 32 << 20)))

    if q_tile is None:
        q_tile = _pick_q_tile(HW, tile_cap)
    assert HW % q_tile == 0 and (q_tile == HW or q_tile % 128 == 0)
    nq = HW // q_tile

    cparams = pltpu.CompilerParams(
        dimension_semantics=("parallel", "parallel"),
        vmem_limit_bytes=vmem_limit,
    )

    # Kernel 1: phi/g/ones projection over all keys, stored bf16 in HBM.
    pg = pl.pallas_call(
        nl_proj_kernel,
        out_shape=jax.ShapeDtypeStruct((B, R, HW), bf16),
        grid_spec=pltpu.PrefetchScalarGridSpec(
            num_scalar_prefetch=0,
            grid=(B, nq),
            in_specs=[
                pl.BlockSpec((1, C, q_tile), lambda b, s: (b, 0, s)),   # x tile
                pl.BlockSpec((R, C), lambda b, s: (0, 0)),              # packed weights
                pl.BlockSpec((R, 1), lambda b, s: (0, 0)),              # packed biases
            ],
            out_specs=pl.BlockSpec((1, R, q_tile), lambda b, s: (b, 0, s)),
        ),
        compiler_params=cparams,
    )(x2, w_pack, b_pack)

    # Kernel 2: attention + W_z + residual per (batch, query tile); both axes parallel.
    z2 = pl.pallas_call(
        nl_attn_kernel,
        out_shape=jax.ShapeDtypeStruct((B, C, HW), x.dtype),
        grid_spec=pltpu.PrefetchScalarGridSpec(
            num_scalar_prefetch=0,
            grid=(B, nq),
            in_specs=[
                pl.BlockSpec((1, C, q_tile), lambda b, q: (b, 0, q)),   # x (queries/residual)
                pl.BlockSpec((1, R, HW), lambda b, q: (b, 0, 0)),       # phi|g|ones (all keys)
                pl.BlockSpec((C, Ci_p), lambda b, q: (0, 0)),           # theta weight^T (bf16)
                pl.BlockSpec((1, Ci_p), lambda b, q: (0, 0)),           # theta bias
                pl.BlockSpec((C, Ci_p), lambda b, q: (0, 0)),           # W_z (BN folded, bf16)
                pl.BlockSpec((C, 1), lambda b, q: (0, 0)),              # W_z + BN bias
            ],
            out_specs=pl.BlockSpec((1, C, q_tile), lambda b, q: (b, 0, q)),
        ),
        compiler_params=cparams,
    )(x2, pg, w_th_t, b_th, w_z, b_z)

    return z2.reshape(B, C, H, W)


# ---------------------------------------------------------------------------
# Params / reference
# ---------------------------------------------------------------------------
def init_nl_params(key, in_channels, inter_channels=None, bn_eps=1e-5):
    C = in_channels
    Ci = inter_channels if inter_channels is not None else max(C // 2, 1)
    ks = jax.random.split(key, 10)

    def conv_w(k, out_c, in_c):
        bound = 1.0 / math.sqrt(in_c)            # PyTorch Conv default init
        return jax.random.uniform(k, (out_c, in_c), jnp.float32, -bound, bound)

    def conv_b(k, out_c, in_c):
        bound = 1.0 / math.sqrt(in_c)
        return jax.random.uniform(k, (out_c,), jnp.float32, -bound, bound)

    # NOTE: the PyTorch module zero-inits the BatchNorm weight/bias so W_z's branch
    # vanishes at init; we use nonzero BN params here so the folded path is exercised.
    return {
        "w_g": conv_w(ks[0], Ci, C), "b_g": conv_b(ks[1], Ci, C),
        "w_theta": conv_w(ks[2], Ci, C), "b_theta": conv_b(ks[3], Ci, C),
        "w_phi": conv_w(ks[4], Ci, C), "b_phi": conv_b(ks[5], Ci, C),
        "w_z": conv_w(ks[6], C, Ci), "b_z": conv_b(ks[7], C, Ci),
        "bn_gamma": 1.0 + 0.1 * jax.random.normal(ks[8], (C,), jnp.float32),
        "bn_beta": 0.1 * jax.random.normal(ks[9], (C,), jnp.float32),
        "bn_mean": jnp.zeros((C,), jnp.float32),
        "bn_var": jnp.ones((C,), jnp.float32),
        "bn_eps": bn_eps,
    }


def nl_reference(x, p):
    """Pure-JAX reference mirroring the PyTorch forward (embedded mode, eval BN)."""
    B, C, H, W = x.shape
    HW = H * W
    x2 = x.reshape(B, C, HW)
    hp = jax.lax.Precision.HIGHEST

    def proj(w, b):
        return jnp.einsum("oc,bcs->bos", w, x2, precision=hp) + b[None, :, None]

    g_x = proj(p["w_g"], p["b_g"])                 # (B, Ci, HW)
    th = proj(p["w_theta"], p["b_theta"])
    ph = proj(p["w_phi"], p["b_phi"])
    f = jnp.einsum("bcq,bck->bqk", th, ph, precision=hp)       # theta^T @ phi
    attn = jax.nn.softmax(f, axis=-1)                          # embedded mode
    y = jnp.einsum("bqk,bck->bcq", attn, g_x, precision=hp)    # (f_div_C @ g_x), channel-major
    wy = (jnp.einsum("oc,bcs->bos", p["w_z"], y, precision=hp)
          + p["b_z"][None, :, None])
    inv = jax.lax.rsqrt(p["bn_var"] + p["bn_eps"])
    wy = ((wy - p["bn_mean"][None, :, None]) * (p["bn_gamma"] * inv)[None, :, None]
          + p["bn_beta"][None, :, None])
    z = wy + x2
    return z.reshape(B, C, H, W)


if __name__ == "__main__":
    B, C, H, W = 2, 32, 16, 16

    key = jax.random.PRNGKey(0)
    k_x, k_p = jax.random.split(key)
    x = jax.random.normal(k_x, (B, C, H, W), jnp.float32)
    params = init_nl_params(k_p, C)

    z_ref = nl_reference(x, params)

    # bf16 MXU operands + approx reciprocal => compare at bf16-appropriate tolerance
    # against the f32 HIGHEST-precision reference.
    ATOL = RTOL = 2e-2

    # default path: auto-selected q_tile (single tile at HW=256), grid=(B, 1)
    z = jax.block_until_ready(nl_forward(x, params))
    assert z.shape == (B, C, H, W)
    assert jnp.allclose(z, z_ref, atol=ATOL, rtol=RTOL), "z mismatch (auto q tile)"

    # query-tiled path (nq=2): exercises multiple q steps with the shared pg block
    z2 = jax.block_until_ready(nl_forward(x, params, q_tile=128))
    assert jnp.allclose(z2, z_ref, atol=ATOL, rtol=RTOL), "z mismatch (q_tile=128)"

    print("KERNEL_OK")
</pallas_src>

<mosaic_0001>
module attributes {stable_mosaic.version = 11 : i64} {
  func.func @nl_proj_kernel(%arg0: i32, %arg1: i32, %arg2: memref<1x32x256xf32, #tpu.memory_space<vmem>>, %arg3: memref<264x32xbf16, #tpu.memory_space<vmem>>, %arg4: memref<264x1xf32, #tpu.memory_space<vmem>>, %arg5: memref<1x264x256xbf16, #tpu.memory_space<vmem>>) attributes {dimension_semantics = [#tpu.dimension_semantics<parallel>, #tpu.dimension_semantics<parallel>], iteration_bounds = array<i64: 2, 1>, scalar_prefetch = 0 : i64, scratch_operands = 0 : i64, tpu.core_type = #tpu.core_type<tc>, window_params = [{transform_indices = @transform_0, window_bounds = array<i64: 1, 32, 256>}, {pipeline_mode = #tpu.pipeline_mode<synchronous>, transform_indices = @transform_1, window_bounds = array<i64: 264, 32>}, {pipeline_mode = #tpu.pipeline_mode<synchronous>, transform_indices = @transform_2, window_bounds = array<i64: 264, 1>}, {transform_indices = @transform_3, window_bounds = array<i64: 1, 264, 256>}]} {
    %c0 = arith.constant 0 : index
    %c0_0 = arith.constant 0 : index
    %c0_1 = arith.constant 0 : index
    %0 = vector.load %arg2[%c0, %c0_0, %c0_1] : memref<1x32x256xf32, #tpu.memory_space<vmem>>, vector<1x32x256xf32>
    %1 = vector.shape_cast %0 : vector<1x32x256xf32> to vector<32x256xf32>
    %2 = arith.truncf %1 : vector<32x256xf32> to vector<32x256xbf16>
    %c0_2 = arith.constant 0 : index
    %c0_3 = arith.constant 0 : index
    %3 = vector.load %arg3[%c0_2, %c0_3] : memref<264x32xbf16, #tpu.memory_space<vmem>>, vector<264x32xbf16>
    %cst = arith.constant dense<0.000000e+00> : vector<264x256xf32>
    %4 = tpu.matmul %3, %2, %cst {dimension_numbers = #tpu.dot_dimension_numbers<[1], [0], [0], [1], [0, 0, 1, 1], [], []>} : vector<264x32xbf16>, vector<32x256xbf16>, vector<264x256xf32> -> vector<264x256xf32>
    %c0_4 = arith.constant 0 : index
    %c0_5 = arith.constant 0 : index
    %5 = vector.load %arg4[%c0_4, %c0_5] : memref<264x1xf32, #tpu.memory_space<vmem>>, vector<264x1xf32>
    %6 = vector.broadcast %5 : vector<264x1xf32> to vector<264x256xf32>
    %7 = arith.addf %4, %6 : vector<264x256xf32>
    %8 = arith.truncf %7 : vector<264x256xf32> to vector<264x256xbf16>
    %c0_6 = arith.constant 0 : index
    %c0_7 = arith.constant 0 : index
    %c0_8 = arith.constant 0 : index
    %9 = vector.load %arg5[%c0_6, %c0_7, %c0_8] : memref<1x264x256xbf16, #tpu.memory_space<vmem>>, vector<1x264x256xbf16>
    %10 = vector.shape_cast %9 : vector<1x264x256xbf16> to vector<264x256xbf16>
    %11 = vector.shape_cast %8 : vector<264x256xbf16> to vector<1x264x256xbf16>
    tpu.vector_store %arg5[%c0_6, %c0_7, %c0_8], %11 {strides = array<i32>} : memref<1x264x256xbf16, #tpu.memory_space<vmem>>, vector<1x264x256xbf16>,
    return
  }
  func.func @transform_0(%arg0: i32, %arg1: i32) -> (i32, i32, i32) {
    %c0_i32 = arith.constant 0 : i32
    %c0_i32_0 = arith.constant 0 : i32
    return %arg0, %c0_i32, %arg1 : i32, i32, i32
  }
  func.func @transform_1(%arg0: i32, %arg1: i32) -> (i32, i32) {
    %c0_i32 = arith.constant 0 : i32
    %c0_i32_0 = arith.constant 0 : i32
    %c0_i32_1 = arith.constant 0 : i32
    return %c0_i32, %c0_i32_0 : i32, i32
  }
  func.func @transform_2(%arg0: i32, %arg1: i32) -> (i32, i32) {
    %c0_i32 = arith.constant 0 : i32
    %c0_i32_0 = arith.constant 0 : i32
    %c0_i32_1 = arith.constant 0 : i32
    return %c0_i32, %c0_i32_0 : i32, i32
  }
  func.func @transform_3(%arg0: i32, %arg1: i32) -> (i32, i32, i32) {
    %c0_i32 = arith.constant 0 : i32
    %c0_i32_0 = arith.constant 0 : i32
    return %arg0, %c0_i32, %arg1 : i32, i32, i32
  }
}

</mosaic_0001>

<llo_original>
// kernel: tpu_custom_call.1
$region0: #{tpu_custom_call.1}
  #allocation0 [shape = 'u32[]', space=smem, size = 0x4, offset = 0x4, fixed_abs, tag = 'smem constant byte address 0x4 - core index']
  #allocation1 [shape = 'u32[144,128]{1,0:T(1,128)}', space=vmem, size = 0x12000, scoped, tag = 'internal scratch']
  %s0 = inlined_call_operand.vmem [shape: f32[2,32,256], index: 0, kind: input, shape index: {}]
  %s1 = inlined_call_operand.vmem [shape: bf16[264,32], index: 1, kind: input, shape index: {}]
  %s2 = inlined_call_operand.vmem [shape: f32[264,1], index: 2, kind: input, shape index: {}]
  %s3 = inlined_call_operand.hbm [shape: bf16[2,264,256], index: 3, kind: output, shape index: {}]
  %s4 = sld [smem:[#allocation0]]
  $region45: #{tpu_custom_call.1} parent=0
    _
  %s6 = ssub.s32 1, %s4
  %s7 = scalar_select 0, %s6, %s4
  $region1: #{tpu_custom_call.1} parent=0
    #allocation2 [shape = 'u8[270336]{0}', space=vmem, size = 0x42000, scoped, tag = 'output window, operand 0']
    #allocation3 [shape = 's32[2]{0}', space=sflag, size = 0x8, scoped, tag = 'scoped memory for tpu_custom_call.1']
    %8 = vsyncpa [#allocation3], 0
    %s9 = scalar_lea.sflag [#allocation3], 1
    %10 = vsyncpa %s9, 0
    loop: start=0, step=1, limit=4
    $region2: #{tpu_custom_call.1} parent=1 // loop_pre_header
      _
    $region3: #{tpu_custom_call.1} parent=1 // loop_header
      %s12 = sphi 0, %s16
      %p13 = scmp.ge.s32.totalorder %s12, 4
      %s19 = sphi 0, %s31
      %s20 = sphi 0, %s27
      %s21 = sphi 0, %s19
      %s22 = sphi 0, %s20
      %s23 = sphi 0, %s21
      %s24 = sphi 0, %s22
      %s36 = sphi 0, %s38
      %s39 = sphi 0, %s36
      %s40 = sphi 0, %s39
      %s56 = sphi 0, %s40
      %s60 = sphi 0, %s60
      %s62 = sphi 0, %s60
      %s63 = sphi 0, %s62
      %s77 = sphi 0, %s63
      %s81 = sphi 0, %s81
      %s83 = sphi 0, %s81
      %s84 = sphi 0, %s83
      %s98 = sphi 0, %s84
      %s106 = sphi 0, %s108
      %s109 = sphi 0, %s106
      %s110 = sphi 0, %s109
      %s126 = sphi 0, %s110
    $region4: #{tpu_custom_call.1} parent=1 // loop_header_branch
      %15 = sbr.rel (%p13) target = $region8
    $region5: #{tpu_custom_call.1} parent=1 // loop_body
      %s17 = ssub.s32 %s12, 1
      %s18 = ssub.s32 %s12, 2
      %s25 = sadd.s32 1, %s20
      %p26 = scmp.ge.s32.totalorder %s25, 1
      %s27 = scalar_select %p26, 0, %s25
      %s28 = sadd.s32 1, %s19
      %s29 = scalar_select %p26, %s28, %s19
      %p30 = scmp.ge.s32.totalorder %s29, 2
      %s31 = scalar_select %p30, 0, %s29
      %s32 = ssub.s32 %s19, %s31
      %s33 = ssub.s32 %s20, %s27
      %s34 = sor.u32 %s32, %s33
      %p35 = scmp.eq.s32.totalorder %s34, 0
      %s37 = sadd.s32 %s36, 1
      %s38 = scalar_select %p35, %s36, %s37
      %p41 = pneg %p35
      %p42 = scmp.eq.s32.totalorder %s12, 1
      %p43 = por %p41, %p42
      %p44 = scmp.ne.s32.totalorder %s36, %s39
      %p45 = scmp.eq.s32.totalorder %s12, 0
      %p46 = por %p44, %p45
      %p47 = scmp.ne.s32.totalorder %s36, %s39
      %p48 = scmp.eq.s32.totalorder %s17, 1
      %p49 = por %p47, %p48
      %p50 = scmp.ne.s32.totalorder %s39, %s40
      %p51 = scmp.eq.s32.totalorder %s17, 0
      %p52 = por %p50, %p51
      %p53 = scmp.ne.s32.totalorder %s39, %s40
      %p54 = scmp.eq.s32.totalorder %s18, 1
      %p55 = por %p53, %p54
      %p57 = scmp.ne.s32.totalorder %s40, %s56
      %p58 = scmp.eq.s32.totalorder %s18, 0
      %p59 = por %p57, %p58
      %s61 = sadd.s32 %s60, 1
      %p64 = scmp.eq.s32.totalorder %s12, 1
      %p65 = scmp.ne.s32.totalorder %s60, %s62
      %p66 = scmp.eq.s32.totalorder %s12, 0
      %p67 = por %p65, %p66
      %p68 = scmp.ne.s32.totalorder %s60, %s62
      %p69 = scmp.eq.s32.totalorder %s17, 1
      %p70 = por %p68, %p69
      %p71 = scmp.ne.s32.totalorder %s62, %s63
      %p72 = scmp.eq.s32.totalorder %s17, 0
      %p73 = por %p71, %p72
      %p74 = scmp.ne.s32.totalorder %s62, %s63
      %p75 = scmp.eq.s32.totalorder %s18, 1
      %p76 = por %p74, %p75
      %p78 = scmp.ne.s32.totalorder %s63, %s77
      %p79 = scmp.eq.s32.totalorder %s18, 0
      %p80 = por %p78, %p79
      %s82 = sadd.s32 %s81, 1
      %p85 = scmp.eq.s32.totalorder %s12, 1
      %p86 = scmp.ne.s32.totalorder %s81, %s83
      %p87 = scmp.eq.s32.totalorder %s12, 0
      %p88 = por %p86, %p87
      %p89 = scmp.ne.s32.totalorder %s81, %s83
      %p90 = scmp.eq.s32.totalorder %s17, 1
      %p91 = por %p89, %p90
      %p92 = scmp.ne.s32.totalorder %s83, %s84
      %p93 = scmp.eq.s32.totalorder %s17, 0
      %p94 = por %p92, %p93
      %p95 = scmp.ne.s32.totalorder %s83, %s84
      %p96 = scmp.eq.s32.totalorder %s18, 1
      %p97 = por %p95, %p96
      %p99 = scmp.ne.s32.totalorder %s84, %s98
      %p100 = scmp.eq.s32.totalorder %s18, 0
      %p101 = por %p99, %p100
      %s102 = ssub.s32 %s19, %s31
      %s103 = ssub.s32 %s20, %s27
      %s104 = sor.u32 %s102, %s103
      %p105 = scmp.eq.s32.totalorder %s104, 0
      %s107 = sadd.s32 %s106, 1
      %s108 = scalar_select %p105, %s106, %s107
      %p111 = pneg %p105
      %p112 = scmp.eq.s32.totalorder %s12, 1
      %p113 = por %p111, %p112
      %p114 = scmp.ne.s32.totalorder %s106, %s109
      %p115 = scmp.eq.s32.totalorder %s12, 0
      %p116 = por %p114, %p115
      %p117 = scmp.ne.s32.totalorder %s106, %s109
      %p118 = scmp.eq.s32.totalorder %s17, 1
      %p119 = por %p117, %p118
      %p120 = scmp.ne.s32.totalorder %s109, %s110
      %p121 = scmp.eq.s32.totalorder %s17, 0
      %p122 = por %p120, %p121
      %p123 = scmp.ne.s32.totalorder %s109, %s110
      %p124 = scmp.eq.s32.totalorder %s18, 1
      %p125 = por %p123, %p124
      %p127 = scmp.ne.s32.totalorder %s110, %s126
      %p128 = scmp.eq.s32.totalorder %s18, 0
      %p129 = por %p127, %p128
      %p130 = scmp.le.s32.totalorder 1, %s12
      %p131 = scmp.lt.s32.totalorder %s12, 3
      %p132 = pnand %p130, %p131
      %p133 = pneg %p132
      // Predicated region
      $region9: #{tpu_custom_call.1} parent=5 // pred_check
        _
      $region10: #{tpu_custom_call.1} parent=5 // pred_check_branch
        %135 = sbr.rel (%p132) target = $region12
      $region11: #{tpu_custom_call.1} parent=5 // pred_region
        %s136 = ssub.s32 %s12, 1
        // Predicated region
        $region13: #{tpu_custom_call.1} parent=11 // pred_check
          %p137 = pneg %p73
        $region14: #{tpu_custom_call.1} parent=11 // pred_check_branch
          %139 = sbr.rel (%p137) target = $region16
        $region15: #{tpu_custom_call.1} parent=11 // pred_region
          _
        $region16: #{tpu_custom_call.1} parent=11 // pred_fallthru
          _
        // Predicated region
        $region17: #{tpu_custom_call.1} parent=11 // pred_check
          %p140 = pneg %p94
        $region18: #{tpu_custom_call.1} parent=11 // pred_check_branch
          %142 = sbr.rel (%p140) target = $region20
        $region19: #{tpu_custom_call.1} parent=11 // pred_region
          _
        $region20: #{tpu_custom_call.1} parent=11 // pred_fallthru
          _
      $region12: #{tpu_custom_call.1} parent=5 // pred_fallthru
        _
      %p143 = scmp.lt.s32.totalorder %s12, 2
      // Predicated region
      $region21: #{tpu_custom_call.1} parent=5 // pred_check
        %p144 = pneg %p143
      $region22: #{tpu_custom_call.1} parent=5 // pred_check_branch
        %146 = sbr.rel (%p144) target = $region24
      $region23: #{tpu_custom_call.1} parent=5 // pred_region
        // Predicated region
        $region25: #{tpu_custom_call.1} parent=23 // pred_check
          %p147 = pneg %p46
        $region26: #{tpu_custom_call.1} parent=23 // pred_check_branch
          %149 = sbr.rel (%p147) target = $region28
        $region27: #{tpu_custom_call.1} parent=23 // pred_region
          %s150 = smul.u32 2, %s20
          %p151 = scmp.lt.s32.totalorder %s19, 1
          %s152 = scalar_select %p151, %s19, 1
          %p153 = scmp.lt.s32.totalorder %s150, 1
          %s154 = scalar_select %p153, %s150, 1
          %s155 = smul.addr %s152, 8
          %s156 = sadd.s32 %s154, %s155
          %s157 = smul.addr %s156, 8
          %s158 = scalar_lea.vmem %s0, %s157
          %s159 = smul.u32 2, %s20
        $region28: #{tpu_custom_call.1} parent=23 // pred_fallthru
          _
      $region24: #{tpu_custom_call.1} parent=5 // pred_fallthru
        _
      %p160 = scmp.le.s32.totalorder 1, %s12
      %p161 = scmp.lt.s32.totalorder %s12, 3
      %p162 = pnand %p160, %p161
      %p163 = pneg %p162
      // Predicated region
      $region29: #{tpu_custom_call.1} parent=5 // pred_check
        _
      $region30: #{tpu_custom_call.1} parent=5 // pred_check_branch
        %165 = sbr.rel (%p162) target = $region32
      $region31: #{tpu_custom_call.1} parent=5 // pred_region
        %s166 = ssub.s32 %s12, 1
        %s167 = smul.u32 2, %s22
        %p168 = scmp.lt.s32.totalorder %s21, 1
        %s169 = scalar_select %p168, %s21, 1
        %p170 = scmp.lt.s32.totalorder %s167, 1
        %s171 = scalar_select %p170, %s167, 1
        %s172 = smul.addr %s169, 8
        %s173 = sadd.s32 %s171, %s172
        %s174 = smul.addr %s173, 8
        %s175 = scalar_lea.vmem %s0, %s174
        %p176 = pneg %p52
        %p177 = pneg %p49
        %p178 = pneg %p73
        %p179 = pneg %p70
        %p180 = pneg %p94
        %p181 = pneg %p91
        %p182 = pneg %p122
        %p183 = pneg %p119
        %s184 = sand.u32 %s109, 1
        %s185 = scalar_lea.sflag [#allocation3], %s184
        %s186 = sand.u32 %s109, 1
        %s187 = smul.addr %s186, 264
        %s188 = scalar_lea.vmem [#allocation2], %s187
        %s189 = smul.u32 2, %s22
        %p190 = scmp.lt.s32.totalorder %s21, 1
        %s191 = scalar_select %p190, %s21, 1
        %p192 = scmp.lt.s32.totalorder %s189, 1
        %s193 = scalar_select %p192, %s189, 1
        %s194 = smul.addr %s191, 8
        %s195 = sadd.s32 %s193, %s194
        %s196 = smul.addr %s195, 8
        %s197 = scalar_lea.vmem %s0, %s196
        %s198 = smul.u32 2, %s22
        %s199 = smul.u32 2, %s22
        %v201 = vld [vmem:[%s197] sm:$0xff]
        %v202 = vld [vmem:[%s197 + $0x8] sm:$0xff]
        %v203 = vld [vmem:[%s197 + $0x10] sm:$0xff]
        %v204 = vld [vmem:[%s197 + $0x18] sm:$0xff]
        %v205 = vld [vmem:[%s197 + $0x20] sm:$0xff]
        %v206 = vld [vmem:[%s197 + $0x28] sm:$0xff]
        %v207 = vld [vmem:[%s197 + $0x30] sm:$0xff]
        %v208 = vld [vmem:[%s197 + $0x38] sm:$0xff]
        %v209 = vpack.c.bf16 %v203, %v201
        %v210 = vpack.c.bf16 %v204, %v202
        %v211 = vpack.c.bf16 %v207, %v205
        %v212 = vpack.c.bf16 %v208, %v206
        %v213 = vld [vmem:[%s1] sm:$0xf]
        %v214 = vld [vmem:[%s1 + $0x4] sm:$0xf]
        %v215 = vld [vmem:[%s1 + $0x8] sm:$0xf]
        %v216 = vld [vmem:[%s1 + $0xc] sm:$0xf]
        %v217 = vld [vmem:[%s1 + $0x10] sm:$0xf]
        %v218 = vld [vmem:[%s1 + $0x14] sm:$0xf]
        %v219 = vld [vmem:[%s1 + $0x18] sm:$0xf]
        %v220 = vld [vmem:[%s1 + $0x1c] sm:$0xf]
        %v221 = vld [vmem:[%s1 + $0x20] sm:$0xf]
        %v222 = vld [vmem:[%s1 + $0x24] sm:$0xf]
        %v223 = vld [vmem:[%s1 + $0x28] sm:$0xf]
        %v224 = vld [vmem:[%s1 + $0x2c] sm:$0xf]
        %v225 = vld [vmem:[%s1 + $0x30] sm:$0xf]
        %v226 = vld [vmem:[%s1 + $0x34] sm:$0xf]
        %v227 = vld [vmem:[%s1 + $0x38] sm:$0xf]
        %v228 = vld [vmem:[%s1 + $0x3c] sm:$0xf]
        %v229 = vld [vmem:[%s1 + $0x40] sm:$0xf]
        %v230 = vld [vmem:[%s1 + $0x44] sm:$0xf]
        %v231 = vld [vmem:[%s1 + $0x48] sm:$0xf]
        %v232 = vld [vmem:[%s1 + $0x4c] sm:$0xf]
        %v233 = vld [vmem:[%s1 + $0x50] sm:$0xf]
        %v234 = vld [vmem:[%s1 + $0x54] sm:$0xf]
        %v235 = vld [vmem:[%s1 + $0x58] sm:$0xf]
        %v236 = vld [vmem:[%s1 + $0x5c] sm:$0xf]
        %v237 = vld [vmem:[%s1 + $0x60] sm:$0xf]
        %v238 = vld [vmem:[%s1 + $0x64] sm:$0xf]
        %v239 = vld [vmem:[%s1 + $0x68] sm:$0xf]
        %v240 = vld [vmem:[%s1 + $0x6c] sm:$0xf]
        %v241 = vld [vmem:[%s1 + $0x70] sm:$0xf]
        %v242 = vld [vmem:[%s1 + $0x74] sm:$0xf]
        %v243 = vld [vmem:[%s1 + $0x78] sm:$0xf]
        %v244 = vld [vmem:[%s1 + $0x7c] sm:$0xf]
        %v245 = vld [vmem:[%s1 + $0x80] sm:$0xf]
        %v246 = vld [vmem:[%s2] sm:$0xff]
        %v247 = vld [vmem:[%s2 + $0x8] sm:$0xff]
        %v248 = vld [vmem:[%s2 + $0x10] sm:$0xff]
        %v249 = vld [vmem:[%s2 + $0x18] sm:$0xff]
        %v250 = vld [vmem:[%s2 + $0x20] sm:$0xff]
        %v251 = vld [vmem:[%s2 + $0x28] sm:$0xff]
        %v252 = vld [vmem:[%s2 + $0x30] sm:$0xff]
        %v253 = vld [vmem:[%s2 + $0x38] sm:$0xff]
        %v254 = vld [vmem:[%s2 + $0x40] sm:$0xff]
        %v255 = vld [vmem:[%s2 + $0x48] sm:$0xff]
        %v256 = vld [vmem:[%s2 + $0x50] sm:$0xff]
        %v257 = vld [vmem:[%s2 + $0x58] sm:$0xff]
        %v258 = vld [vmem:[%s2 + $0x60] sm:$0xff]
        %v259 = vld [vmem:[%s2 + $0x68] sm:$0xff]
        %v260 = vld [vmem:[%s2 + $0x70] sm:$0xff]
        %v261 = vld [vmem:[%s2 + $0x78] sm:$0xff]
        %v262 = vld [vmem:[%s2 + $0x80] sm:$0xff]
        %v263 = vld [vmem:[%s2 + $0x88] sm:$0xff]
        %v264 = vld [vmem:[%s2 + $0x90] sm:$0xff]
        %v265 = vld [vmem:[%s2 + $0x98] sm:$0xff]
        %v266 = vld [vmem:[%s2 + $0xa0] sm:$0xff]
        %v267 = vld [vmem:[%s2 + $0xa8] sm:$0xff]
        %v268 = vld [vmem:[%s2 + $0xb0] sm:$0xff]
        %v269 = vld [vmem:[%s2 + $0xb8] sm:$0xff]
        %v270 = vld [vmem:[%s2 + $0xc0] sm:$0xff]
        %v271 = vld [vmem:[%s2 + $0xc8] sm:$0xff]
        %v272 = vld [vmem:[%s2 + $0xd0] sm:$0xff]
        %v273 = vld [vmem:[%s2 + $0xd8] sm:$0xff]
        %v274 = vld [vmem:[%s2 + $0xe0] sm:$0xff]
        %v275 = vld [vmem:[%s2 + $0xe8] sm:$0xff]
        %v276 = vld [vmem:[%s2 + $0xf0] sm:$0xff]
        %v277 = vld [vmem:[%s2 + $0xf8] sm:$0xff]
        %v278 = vld [vmem:[%s2 + $0x100] sm:$0xff]
        %280 = vset.pattern.permute.xlu0 0
        %281 = vperm.xlu0 %280, %v246
        %v282 = vpop.permute.xlu0 %281
        %285 = vset.pattern.permute.xlu0 0
        %286 = vperm.xlu0 %285, %v247
        %v287 = vpop.permute.xlu0 %286
        %290 = vset.pattern.permute.xlu0 0
        %291 = vperm.xlu0 %290, %v248
        %v292 = vpop.permute.xlu0 %291
        %295 = vset.pattern.permute.xlu0 0
        %296 = vperm.xlu0 %295, %v249
        %v297 = vpop.permute.xlu0 %296
        %300 = vset.pattern.permute.xlu0 0
        %301 = vperm.xlu0 %300, %v250
        %v302 = vpop.permute.xlu0 %301
        %305 = vset.pattern.permute.xlu0 0
        %306 = vperm.xlu0 %305, %v251
        %v307 = vpop.permute.xlu0 %306
        %310 = vset.pattern.permute.xlu0 0
        %311 = vperm.xlu0 %310, %v252
        %v312 = vpop.permute.xlu0 %311
        %315 = vset.pattern.permute.xlu0 0
        %316 = vperm.xlu0 %315, %v253
        %v317 = vpop.permute.xlu0 %316
        %320 = vset.pattern.permute.xlu0 0
        %321 = vperm.xlu0 %320, %v254
        %v322 = vpop.permute.xlu0 %321
        %325 = vset.pattern.permute.xlu0 0
        %326 = vperm.xlu0 %325, %v255
        %v327 = vpop.permute.xlu0 %326
        %330 = vset.pattern.permute.xlu0 0
        %331 = vperm.xlu0 %330, %v256
        %v332 = vpop.permute.xlu0 %331
        %335 = vset.pattern.permute.xlu0 0
        %336 = vperm.xlu0 %335, %v257
        %v337 = vpop.permute.xlu0 %336
        %340 = vset.pattern.permute.xlu0 0
        %341 = vperm.xlu0 %340, %v258
        %v342 = vpop.permute.xlu0 %341
        %345 = vset.pattern.permute.xlu0 0
        %346 = vperm.xlu0 %345, %v259
        %v347 = vpop.permute.xlu0 %346
        %350 = vset.pattern.permute.xlu0 0
        %351 = vperm.xlu0 %350, %v260
        %v352 = vpop.permute.xlu0 %351
        %355 = vset.pattern.permute.xlu0 0
        %356 = vperm.xlu0 %355, %v261
        %v357 = vpop.permute.xlu0 %356
        %360 = vset.pattern.permute.xlu0 0
        %361 = vperm.xlu0 %360, %v262
        %v362 = vpop.permute.xlu0 %361
        %365 = vset.pattern.permute.xlu0 0
        %366 = vperm.xlu0 %365, %v263
        %v367 = vpop.permute.xlu0 %366
        %370 = vset.pattern.permute.xlu0 0
        %371 = vperm.xlu0 %370, %v264
        %v372 = vpop.permute.xlu0 %371
        %375 = vset.pattern.permute.xlu0 0
        %376 = vperm.xlu0 %375, %v265
        %v377 = vpop.permute.xlu0 %376
        %380 = vset.pattern.permute.xlu0 0
        %381 = vperm.xlu0 %380, %v266
        %v382 = vpop.permute.xlu0 %381
        %385 = vset.pattern.permute.xlu0 0
        %386 = vperm.xlu0 %385, %v267
        %v387 = vpop.permute.xlu0 %386
        %390 = vset.pattern.permute.xlu0 0
        %391 = vperm.xlu0 %390, %v268
        %v392 = vpop.permute.xlu0 %391
        %395 = vset.pattern.permute.xlu0 0
        %396 = vperm.xlu0 %395, %v269
        %v397 = vpop.permute.xlu0 %396
        %400 = vset.pattern.permute.xlu0 0
        %401 = vperm.xlu0 %400, %v270
        %v402 = vpop.permute.xlu0 %401
        %405 = vset.pattern.permute.xlu0 0
        %406 = vperm.xlu0 %405, %v271
        %v407 = vpop.permute.xlu0 %406
        %410 = vset.pattern.permute.xlu0 0
        %411 = vperm.xlu0 %410, %v272
        %v412 = vpop.permute.xlu0 %411
        %415 = vset.pattern.permute.xlu0 0
        %416 = vperm.xlu0 %415, %v273
        %v417 = vpop.permute.xlu0 %416
        %420 = vset.pattern.permute.xlu0 0
        %421 = vperm.xlu0 %420, %v274
        %v422 = vpop.permute.xlu0 %421
        %425 = vset.pattern.permute.xlu0 0
        %426 = vperm.xlu0 %425, %v275
        %v427 = vpop.permute.xlu0 %426
        %430 = vset.pattern.permute.xlu0 0
        %431 = vperm.xlu0 %430, %v276
        %v432 = vpop.permute.xlu0 %431
        %435 = vset.pattern.permute.xlu0 0
        %436 = vperm.xlu0 %435, %v277
        %v437 = vpop.permute.xlu0 %436
        %440 = vset.pattern.permute.xlu0 0
        %441 = vperm.xlu0 %440, %v278
        %v442 = vpop.permute.xlu0 %441
        %v477 = vunpack.c.l.b16 %v213
        %v478 = vunpack.c.l.b16 %v214
        %v479 = vunpack.c.l.b16 %v215
        %v480 = vunpack.c.l.b16 %v216
        %v481 = vunpack.c.l.b16 %v217
        %v482 = vunpack.c.l.b16 %v218
        %v483 = vunpack.c.l.b16 %v219
        %v484 = vunpack.c.l.b16 %v220
        %v485 = vunpack.c.l.b16 %v221
        %v486 = vunpack.c.l.b16 %v222
        %v487 = vunpack.c.l.b16 %v223
        %v488 = vunpack.c.l.b16 %v224
        %v489 = vunpack.c.l.b16 %v225
        %v490 = vunpack.c.l.b16 %v226
        %v491 = vunpack.c.l.b16 %v227
        %v492 = vunpack.c.l.b16 %v228
        %v493 = vunpack.c.l.b16 %v229
        %v494 = vunpack.c.l.b16 %v230
        %v495 = vunpack.c.l.b16 %v231
        %v496 = vunpack.c.l.b16 %v232
        %v497 = vunpack.c.l.b16 %v233
        %v498 = vunpack.c.l.b16 %v234
        %v499 = vunpack.c.l.b16 %v235
        %v500 = vunpack.c.l.b16 %v236
        %v501 = vunpack.c.l.b16 %v237
        %v502 = vunpack.c.l.b16 %v238
        %v503 = vunpack.c.l.b16 %v239
        %v504 = vunpack.c.l.b16 %v240
        %v505 = vunpack.c.l.b16 %v241
        %v506 = vunpack.c.l.b16 %v242
        %v507 = vunpack.c.l.b16 %v243
        %v508 = vunpack.c.l.b16 %v244
        %v509 = vunpack.c.l.b16 %v245
        %v510 = vpack.c.b16 %v478, %v477
        %v511 = vpack.c.b16 %v480, %v479
        %v512 = vpack.c.b16 %v482, %v481
        %v513 = vpack.c.b16 %v484, %v483
        %v514 = vpack.c.b16 %v486, %v485
        %v515 = vpack.c.b16 %v488, %v487
        %v516 = vpack.c.b16 %v490, %v489
        %v517 = vpack.c.b16 %v492, %v491
        %v518 = vpack.c.b16 %v494, %v493
        %v519 = vpack.c.b16 %v496, %v495
        %v520 = vpack.c.b16 %v498, %v497
        %v521 = vpack.c.b16 %v500, %v499
        %v522 = vpack.c.b16 %v502, %v501
        %v523 = vpack.c.b16 %v504, %v503
        %v524 = vpack.c.b16 %v506, %v505
        %v525 = vpack.c.b16 %v508, %v507
        %v526 = vpack.c.b16 %v509, %v509
        %vm527 = vcmask 261120
        %v529 = vsel %vm527, %v510, 0
        %v532 = vsel %vm527, %v511, 0
        %v535 = vsel %vm527, %v512, 0
        %v538 = vsel %vm527, %v513, 0
        %v541 = vsel %vm527, %v514, 0
        %v544 = vsel %vm527, %v515, 0
        %v547 = vsel %vm527, %v516, 0
        %v550 = vsel %vm527, %v517, 0
        %v553 = vsel %vm527, %v518, 0
        %v556 = vsel %vm527, %v519, 0
        %v559 = vsel %vm527, %v520, 0
        %v562 = vsel %vm527, %v521, 0
        %v565 = vsel %vm527, %v522, 0
        %v568 = vsel %vm527, %v523, 0
        %v571 = vsel %vm527, %v524, 0
        %v574 = vsel %vm527, %v525, 0
        %v577 = vsel %vm527, %v526, 0
        %579 = vmatprep.subr.bf16.mxu0 %v210
        %580 = vmatpush1.bf16.msra.mxu0 %v209
        %581 = vmatprep.subr.bf16.mxu0 %v212
        %582 = vmatpush1.bf16.msra.mxu0 %v211
        %583 = vmatprep.subr.bf16.mxu0 0
        %584 = vmatpush1.bf16.msra.mxu0 0
        %585 = vmatprep.subr.bf16.mxu0 0
        %586 = vmatpush1.bf16.msra.mxu0 0
        %587 = vmatprep.subr.bf16.mxu0 0
        %588 = vmatpush1.bf16.msra.mxu0 0
        %589 = vmatprep.subr.bf16.mxu0 0
        %590 = vmatpush1.bf16.msra.mxu0 0
        %591 = vmatprep.subr.bf16.mxu0 0
        %592 = vmatpush1.bf16.msra.mxu0 0
        %593 = vmatprep.subr.bf16.mxu0 0
        %594 = vmatpush1.bf16.msra.mxu0 0
        %595 = vmatprep.subr.bf16.mxu0 0
        %596 = vmatpush1.bf16.msra.mxu0 0
        %597 = vmatprep.subr.bf16.mxu0 0
        %598 = vmatpush1.bf16.msra.mxu0 0
        %599 = vmatprep.subr.bf16.mxu0 0
        %600 = vmatpush1.bf16.msra.mxu0 0
        %601 = vmatprep.subr.bf16.mxu0 0
        %602 = vmatpush1.bf16.msra.mxu0 0
        %603 = vmatprep.subr.bf16.mxu0 0
        %604 = vmatpush1.bf16.msra.mxu0 0
        %605 = vmatprep.subr.bf16.mxu0 0
        %606 = vmatpush1.bf16.msra.mxu0 0
        %607 = vmatprep.subr.bf16.mxu0 0
        %608 = vmatpush1.bf16.msra.mxu0 0
        %609 = vmatprep.subr.bf16.mxu0 0
        %610 = vmatpush1.bf16.msra.mxu0 0
        %611 = vmatprep.mubr.bf16.mxu0 0
        %612 = vmatmul.mubr.bf16.gmra.mrb[0].mxu0 %v529
        %v613 = vpop.f32.mrb[0].mxu0
        %v614 = vadd.f32 %v282, %v613
        %v615 = vpop.f32.mrb[0].mxu0
        %v616 = vadd.f32 %v282, %v615
        %v617 = vpop.f32.mrb[0].mxu0
        %v618 = vadd.f32 %v287, %v617
        %v619 = vpop.f32.mrb[0].mxu0
        %v620 = vadd.f32 %v287, %v619
        %621 = vmatprep.mubr.bf16.mxu0 0
        %622 = vmatmul.mubr.bf16.gmra.mrb[0].mxu0 %v532
        %v623 = vpop.f32.mrb[0].mxu0
        %v624 = vadd.f32 %v292, %v623
        %v625 = vpop.f32.mrb[0].mxu0
        %v626 = vadd.f32 %v292, %v625
        %v627 = vpop.f32.mrb[0].mxu0
        %v628 = vadd.f32 %v297, %v627
        %v629 = vpop.f32.mrb[0].mxu0
        %v630 = vadd.f32 %v297, %v629
        %631 = vmatprep.mubr.bf16.mxu0 0
        %632 = vmatmul.mubr.bf16.gmra.mrb[0].mxu0 %v535
        %v633 = vpop.f32.mrb[0].mxu0
        %v634 = vadd.f32 %v302, %v633
        %v635 = vpop.f32.mrb[0].mxu0
        %v636 = vadd.f32 %v302, %v635
        %v637 = vpop.f32.mrb[0].mxu0
        %v638 = vadd.f32 %v307, %v637
        %v639 = vpop.f32.mrb[0].mxu0
        %v640 = vadd.f32 %v307, %v639
        %641 = vmatprep.mubr.bf16.mxu0 0
        %642 = vmatmul.mubr.bf16.gmra.mrb[0].mxu0 %v538
        %v643 = vpop.f32.mrb[0].mxu0
        %v644 = vadd.f32 %v312, %v643
        %v645 = vpop.f32.mrb[0].mxu0
        %v646 = vadd.f32 %v312, %v645
        %v647 = vpop.f32.mrb[0].mxu0
        %v648 = vadd.f32 %v317, %v647
        %v649 = vpop.f32.mrb[0].mxu0
        %v650 = vadd.f32 %v317, %v649
        %651 = vmatprep.mubr.bf16.mxu0 0
        %652 = vmatmul.mubr.bf16.gmra.mrb[0].mxu0 %v541
        %v653 = vpop.f32.mrb[0].mxu0
        %v654 = vadd.f32 %v322, %v653
        %v655 = vpop.f32.mrb[0].mxu0
        %v656 = vadd.f32 %v322, %v655
        %v657 = vpop.f32.mrb[0].mxu0
        %v658 = vadd.f32 %v327, %v657
        %v659 = vpop.f32.mrb[0].mxu0
        %v660 = vadd.f32 %v327, %v659
        %661 = vmatprep.mubr.bf16.mxu0 0
        %662 = vmatmul.mubr.bf16.gmra.mrb[0].mxu0 %v544
        %v663 = vpop.f32.mrb[0].mxu0
        %v664 = vadd.f32 %v332, %v663
        %v665 = vpop.f32.mrb[0].mxu0
        %v666 = vadd.f32 %v332, %v665
        %v667 = vpop.f32.mrb[0].mxu0
        %v668 = vadd.f32 %v337, %v667
        %v669 = vpop.f32.mrb[0].mxu0
        %v670 = vadd.f32 %v337, %v669
        %671 = vmatprep.mubr.bf16.mxu0 0
        %672 = vmatmul.mubr.bf16.gmra.mrb[0].mxu0 %v547
        %v673 = vpop.f32.mrb[0].mxu0
        %v674 = vadd.f32 %v342, %v673
        %v675 = vpop.f32.mrb[0].mxu0
        %v676 = vadd.f32 %v342, %v675
        %v677 = vpop.f32.mrb[0].mxu0
        %v678 = vadd.f32 %v347, %v677
        %v679 = vpop.f32.mrb[0].mxu0
        %v680 = vadd.f32 %v347, %v679
        %681 = vmatprep.mubr.bf16.mxu0 0
        %682 = vmatmul.mubr.bf16.gmra.mrb[0].mxu0 %v550
        %v683 = vpop.f32.mrb[0].mxu0
        %v684 = vadd.f32 %v352, %v683
        %v685 = vpop.f32.mrb[0].mxu0
        %v686 = vadd.f32 %v352, %v685
        %v687 = vpop.f32.mrb[0].mxu0
        %v688 = vadd.f32 %v357, %v687
        %v689 = vpop.f32.mrb[0].mxu0
        %v690 = vadd.f32 %v357, %v689
        %691 = vmatprep.mubr.bf16.mxu0 0
        %692 = vmatmul.mubr.bf16.gmra.mrb[0].mxu0 %v553
        %v693 = vpop.f32.mrb[0].mxu0
        %v694 = vadd.f32 %v362, %v693
        %v695 = vpop.f32.mrb[0].mxu0
        %v696 = vadd.f32 %v362, %v695
        %v697 = vpop.f32.mrb[0].mxu0
        %v698 = vadd.f32 %v367, %v697
        %v699 = vpop.f32.mrb[0].mxu0
        %v700 = vadd.f32 %v367, %v699
        %701 = vmatprep.mubr.bf16.mxu0 0
        %702 = vmatmul.mubr.bf16.gmra.mrb[0].mxu0 %v556
        %v703 = vpop.f32.mrb[0].mxu0
        %v704 = vadd.f32 %v372, %v703
        %v705 = vpop.f32.mrb[0].mxu0
        %v706 = vadd.f32 %v372, %v705
        %v707 = vpop.f32.mrb[0].mxu0
        %v708 = vadd.f32 %v377, %v707
        %v709 = vpop.f32.mrb[0].mxu0
        %v710 = vadd.f32 %v377, %v709
        %711 = vmatprep.mubr.bf16.mxu0 0
        %712 = vmatmul.mubr.bf16.gmra.mrb[0].mxu0 %v559
        %v713 = vpop.f32.mrb[0].mxu0
        %v714 = vadd.f32 %v382, %v713
        %v715 = vpop.f32.mrb[0].mxu0
        %v716 = vadd.f32 %v382, %v715
        %v717 = vpop.f32.mrb[0].mxu0
        %v718 = vadd.f32 %v387, %v717
        %v719 = vpop.f32.mrb[0].mxu0
        %v720 = vadd.f32 %v387, %v719
        %721 = vmatprep.mubr.bf16.mxu0 0
        %722 = vmatmul.mubr.bf16.gmra.mrb[0].mxu0 %v562
        %v723 = vpop.f32.mrb[0].mxu0
        %v724 = vadd.f32 %v392, %v723
        %v725 = vpop.f32.mrb[0].mxu0
        %v726 = vadd.f32 %v392, %v725
        %v727 = vpop.f32.mrb[0].mxu0
        %v728 = vadd.f32 %v397, %v727
        %v729 = vpop.f32.mrb[0].mxu0
        %v730 = vadd.f32 %v397, %v729
        %731 = vmatprep.mubr.bf16.mxu0 0
        %732 = vmatmul.mubr.bf16.gmra.mrb[0].mxu0 %v565
        %v733 = vpop.f32.mrb[0].mxu0
        %v734 = vadd.f32 %v402, %v733
        %v735 = vpop.f32.mrb[0].mxu0
        %v736 = vadd.f32 %v402, %v735
        %v737 = vpop.f32.mrb[0].mxu0
        %v738 = vadd.f32 %v407, %v737
        %v739 = vpop.f32.mrb[0].mxu0
        %v740 = vadd.f32 %v407, %v739
        %741 = vmatprep.mubr.bf16.mxu0 0
        %742 = vmatmul.mubr.bf16.gmra.mrb[0].mxu0 %v568
        %v743 = vpop.f32.mrb[0].mxu0
        %v744 = vadd.f32 %v412, %v743
        %v745 = vpop.f32.mrb[0].mxu0
        %v746 = vadd.f32 %v412, %v745
        %v747 = vpop.f32.mrb[0].mxu0
        %v748 = vadd.f32 %v417, %v747
        %v749 = vpop.f32.mrb[0].mxu0
        %v750 = vadd.f32 %v417, %v749
        %751 = vmatprep.mubr.bf16.mxu0 0
        %752 = vmatmul.mubr.bf16.gmra.mrb[0].mxu0 %v571
        %v753 = vpop.f32.mrb[0].mxu0
        %v754 = vadd.f32 %v422, %v753
        %v755 = vpop.f32.mrb[0].mxu0
        %v756 = vadd.f32 %v422, %v755
        %v757 = vpop.f32.mrb[0].mxu0
        %v758 = vadd.f32 %v427, %v757
        %v759 = vpop.f32.mrb[0].mxu0
        %v760 = vadd.f32 %v427, %v759
        %761 = vmatprep.mubr.bf16.mxu0 0
        %762 = vmatmul.mubr.bf16.gmra.mrb[0].mxu0 %v574
        %v763 = vpop.f32.mrb[0].mxu0
        %v764 = vadd.f32 %v432, %v763
        %v765 = vpop.f32.mrb[0].mxu0
        %v766 = vadd.f32 %v432, %v765
        %v767 = vpop.f32.mrb[0].mxu0
        %v768 = vadd.f32 %v437, %v767
        %v769 = vpop.f32.mrb[0].mxu0
        %v770 = vadd.f32 %v437, %v769
        %771 = vmatprep.mubr.bf16.mxu0 0
        %772 = vmatmul.mubr.bf16.gmra.mrb[0].mxu0 %v577
        %v773 = vpop.f32.mrb[0].mxu0
        %v774 = vadd.f32 %v442, %v773
        %v775 = vpop.f32.mrb[0].mxu0
        %v776 = vadd.f32 %v442, %v775
        %v777 = vpop.f32.mrb[0].mxu0
        %v778 = vpop.f32.mrb[0].mxu0
        %779 = vdwg.mxu0
        %v780 = vpack.c.bf16 %v618, %v614
        %v781 = vpack.c.bf16 %v620, %v616
        %v782 = vpack.c.bf16 %v628, %v624
        %v783 = vpack.c.bf16 %v630, %v626
        %v784 = vpack.c.bf16 %v638, %v634
        %v785 = vpack.c.bf16 %v640, %v636
        %v786 = vpack.c.bf16 %v648, %v644
        %v787 = vpack.c.bf16 %v650, %v646
        %v788 = vpack.c.bf16 %v658, %v654
        %v789 = vpack.c.bf16 %v660, %v656
        %v790 = vpack.c.bf16 %v668, %v664
        %v791 = vpack.c.bf16 %v670, %v666
        %v792 = vpack.c.bf16 %v678, %v674
        %v793 = vpack.c.bf16 %v680, %v676
        %v794 = vpack.c.bf16 %v688, %v684
        %v795 = vpack.c.bf16 %v690, %v686
        %v796 = vpack.c.bf16 %v698, %v694
        %v797 = vpack.c.bf16 %v700, %v696
        %v798 = vpack.c.bf16 %v708, %v704
        %v799 = vpack.c.bf16 %v710, %v706
        %v800 = vpack.c.bf16 %v718, %v714
        %v801 = vpack.c.bf16 %v720, %v716
        %v802 = vpack.c.bf16 %v728, %v724
        %v803 = vpack.c.bf16 %v730, %v726
        %v804 = vpack.c.bf16 %v738, %v734
        %v805 = vpack.c.bf16 %v740, %v736
        %v806 = vpack.c.bf16 %v748, %v744
        %v807 = vpack.c.bf16 %v750, %v746
        %v808 = vpack.c.bf16 %v758, %v754
        %v809 = vpack.c.bf16 %v760, %v756
        %v810 = vpack.c.bf16 %v768, %v764
        %v811 = vpack.c.bf16 %v770, %v766
        %v812 = vpack.c.bf16 %v774, %v774
        %v813 = vpack.c.bf16 %v776, %v776
        %v848 = vunpack.c.l.b16 %v780
        %v849 = vunpack.c.l.b16 %v781
        %v850 = vunpack.c.h.b16 %v780
        %v851 = vunpack.c.h.b16 %v781
        %v852 = vunpack.c.l.b16 %v782
        %v853 = vunpack.c.l.b16 %v783
        %v854 = vunpack.c.h.b16 %v782
        %v855 = vunpack.c.h.b16 %v783
        %v856 = vunpack.c.l.b16 %v784
        %v857 = vunpack.c.l.b16 %v785
        %v858 = vunpack.c.h.b16 %v784
        %v859 = vunpack.c.h.b16 %v785
        %v860 = vunpack.c.l.b16 %v786
        %v861 = vunpack.c.l.b16 %v787
        %v862 = vunpack.c.h.b16 %v786
        %v863 = vunpack.c.h.b16 %v787
        %v864 = vunpack.c.l.b16 %v788
        %v865 = vunpack.c.l.b16 %v789
        %v866 = vunpack.c.h.b16 %v788
        %v867 = vunpack.c.h.b16 %v789
        %v868 = vunpack.c.l.b16 %v790
        %v869 = vunpack.c.l.b16 %v791
        %v870 = vunpack.c.h.b16 %v790
        %v871 = vunpack.c.h.b16 %v791
        %v872 = vunpack.c.l.b16 %v792
        %v873 = vunpack.c.l.b16 %v793
        %v874 = vunpack.c.h.b16 %v792
        %v875 = vunpack.c.h.b16 %v793
        %v876 = vunpack.c.l.b16 %v794
        %v877 = vunpack.c.l.b16 %v795
        %v878 = vunpack.c.h.b16 %v794
        %v879 = vunpack.c.h.b16 %v795
        %v880 = vunpack.c.l.b16 %v796
        %v881 = vunpack.c.l.b16 %v797
        %v882 = vunpack.c.h.b16 %v796
        %v883 = vunpack.c.h.b16 %v797
        %v884 = vunpack.c.l.b16 %v798
        %v885 = vunpack.c.l.b16 %v799
        %v886 = vunpack.c.h.b16 %v798
        %v887 = vunpack.c.h.b16 %v799
        %v888 = vunpack.c.l.b16 %v800
        %v889 = vunpack.c.l.b16 %v801
        %v890 = vunpack.c.h.b16 %v800
        %v891 = vunpack.c.h.b16 %v801
        %v892 = vunpack.c.l.b16 %v802
        %v893 = vunpack.c.l.b16 %v803
        %v894 = vunpack.c.h.b16 %v802
        %v895 = vunpack.c.h.b16 %v803
        %v896 = vunpack.c.l.b16 %v804
        %v897 = vunpack.c.l.b16 %v805
        %v898 = vunpack.c.h.b16 %v804
        %v899 = vunpack.c.h.b16 %v805
        %v900 = vunpack.c.l.b16 %v806
        %v901 = vunpack.c.l.b16 %v807
        %v902 = vunpack.c.h.b16 %v806
        %v903 = vunpack.c.h.b16 %v807
        %v904 = vunpack.c.l.b16 %v808
        %v905 = vunpack.c.l.b16 %v809
        %v906 = vunpack.c.h.b16 %v808
        %v907 = vunpack.c.h.b16 %v809
        %v908 = vunpack.c.l.b16 %v810
        %v909 = vunpack.c.l.b16 %v811
        %v910 = vunpack.c.h.b16 %v810
        %v911 = vunpack.c.h.b16 %v811
        %v912 = vunpack.c.l.b16 %v812
        %v913 = vunpack.c.l.b16 %v813
        %v914 = vpack.c.b16 %v849, %v848
        %v915 = vpack.c.b16 %v851, %v850
        %v916 = vpack.c.b16 %v853, %v852
        %v917 = vpack.c.b16 %v855, %v854
        %v918 = vpack.c.b16 %v857, %v856
        %v919 = vpack.c.b16 %v859, %v858
        %v920 = vpack.c.b16 %v861, %v860
        %v921 = vpack.c.b16 %v863, %v862
        %v922 = vpack.c.b16 %v865, %v864
        %v923 = vpack.c.b16 %v867, %v866
        %v924 = vpack.c.b16 %v869, %v868
        %v925 = vpack.c.b16 %v871, %v870
        %v926 = vpack.c.b16 %v873, %v872
        %v927 = vpack.c.b16 %v875, %v874
        %v928 = vpack.c.b16 %v877, %v876
        %v929 = vpack.c.b16 %v879, %v878
        %v930 = vpack.c.b16 %v881, %v880
        %v931 = vpack.c.b16 %v883, %v882
        %v932 = vpack.c.b16 %v885, %v884
        %v933 = vpack.c.b16 %v887, %v886
        %v934 = vpack.c.b16 %v889, %v888
        %v935 = vpack.c.b16 %v891, %v890
        %v936 = vpack.c.b16 %v893, %v892
        %v937 = vpack.c.b16 %v895, %v894
        %v938 = vpack.c.b16 %v897, %v896
        %v939 = vpack.c.b16 %v899, %v898
        %v940 = vpack.c.b16 %v901, %v900
        %v941 = vpack.c.b16 %v903, %v902
        %v942 = vpack.c.b16 %v905, %v904
        %v943 = vpack.c.b16 %v907, %v906
        %v944 = vpack.c.b16 %v909, %v908
        %v945 = vpack.c.b16 %v911, %v910
        %v946 = vpack.c.b16 %v913, %v912
        %980 = vst [vmem:[%s188] sm:$0xff] %v914
        %981 = vst [vmem:[%s188 + $0x8] sm:$0xff] %v915
        %982 = vst [vmem:[%s188 + $0x10] sm:$0xff] %v916
        %983 = vst [vmem:[%s188 + $0x18] sm:$0xff] %v917
        %984 = vst [vmem:[%s188 + $0x20] sm:$0xff] %v918
        %985 = vst [vmem:[%s188 + $0x28] sm:$0xff] %v919
        %986 = vst [vmem:[%s188 + $0x30] sm:$0xff] %v920
        %987 = vst [vmem:[%s188 + $0x38] sm:$0xff] %v921
        %988 = vst [vmem:[%s188 + $0x40] sm:$0xff] %v922
        %989 = vst [vmem:[%s188 + $0x48] sm:$0xff] %v923
        %990 = vst [vmem:[%s188 + $0x50] sm:$0xff] %v924
        %991 = vst [vmem:[%s188 + $0x58] sm:$0xff] %v925
        %992 = vst [vmem:[%s188 + $0x60] sm:$0xff] %v926
        %993 = vst [vmem:[%s188 + $0x68] sm:$0xff] %v927
        %994 = vst [vmem:[%s188 + $0x70] sm:$0xff] %v928
        %995 = vst [vmem:[%s188 + $0x78] sm:$0xff] %v929
        %996 = vst [vmem:[%s188 + $0x80] sm:$0xff] %v930
        %997 = vst [vmem:[%s188 + $0x88] sm:$0xff] %v931
        %998 = vst [vmem:[%s188 + $0x90] sm:$0xff] %v932
        %999 = vst [vmem:[%s188 + $0x98] sm:$0xff] %v933
        %1000 = vst [vmem:[%s188 + $0xa0] sm:$0xff] %v934
        %1001 = vst [vmem:[%s188 + $0xa8] sm:$0xff] %v935
        %1002 = vst [vmem:[%s188 + $0xb0] sm:$0xff] %v936
        %1003 = vst [vmem:[%s188 + $0xb8] sm:$0xff] %v937
        %1004 = vst [vmem:[%s188 + $0xc0] sm:$0xff] %v938
        %1005 = vst [vmem:[%s188 + $0xc8] sm:$0xff] %v939
        %1006 = vst [vmem:[%s188 + $0xd0] sm:$0xff] %v940
        %1007 = vst [vmem:[%s188 + $0xd8] sm:$0xff] %v941
        %1008 = vst [vmem:[%s188 + $0xe0] sm:$0xff] %v942
        %1009 = vst [vmem:[%s188 + $0xe8] sm:$0xff] %v943
        %1010 = vst [vmem:[%s188 + $0xf0] sm:$0xff] %v944
        %1011 = vst [vmem:[%s188 + $0xf8] sm:$0xff] %v945
        %1012 = vst [vmem:[%s188 + $0x100] sm:$0xff] %v946
        %s1013 = sand.u32 %s109, 1
        %s1014 = scalar_lea.sflag [#allocation3], %s1013
        %s1015 = sand.u32 %s109, 1
        %s1016 = smul.addr %s1015, 264
        %s1017 = scalar_lea.vmem [#allocation2], %s1016
        // Predicated region
        $region33: #{tpu_custom_call.1} parent=31 // pred_check
          %p1018 = pneg %p119
        $region34: #{tpu_custom_call.1} parent=31 // pred_check_branch
          %1020 = sbr.rel (%p1018) target = $region36
        $region35: #{tpu_custom_call.1} parent=31 // pred_region
          %s1021 = smul.u32 2, %s22
          %s1023 = ssub.s32 4224, 4224
          %1024 = vsyncadd %s1014, %s1023
          %s1025 = smul.addr %s21, 66
          %s1026 = sadd.s32 %s1021, %s1025
          %s1027 = smul.addr %s1026, 64
          %s1028 = scalar_lea.hbm %s3, %s1027
          %s1029 = sshll.u32 %s1017, 4
          %s1030 = int_to_ptr.vmem [resolvable:$true] %s1029
          %1035 = dma.vmem_to_hbm [thread:$0]  %s1030, 4224, %s1028, %s1014, 128, 128, 8
        $region36: #{tpu_custom_call.1} parent=31 // pred_fallthru
          _
      $region32: #{tpu_custom_call.1} parent=5 // pred_fallthru
        _
      %p1036 = scmp.le.s32.totalorder 2, %s12
      // Predicated region
      $region37: #{tpu_custom_call.1} parent=5 // pred_check
        %p1037 = pneg %p1036
      $region38: #{tpu_custom_call.1} parent=5 // pred_check_branch
        %1039 = sbr.rel (%p1037) target = $region40
      $region39: #{tpu_custom_call.1} parent=5 // pred_region
        %s1040 = ssub.s32 %s12, 2
        // Predicated region
        $region41: #{tpu_custom_call.1} parent=39 // pred_check
          %p1041 = pneg %p125
        $region42: #{tpu_custom_call.1} parent=39 // pred_check_branch
          %1043 = sbr.rel (%p1041) target = $region44
        $region43: #{tpu_custom_call.1} parent=39 // pred_region
          %s1044 = sand.u32 %s110, 1
          %s1045 = scalar_lea.sflag [#allocation3], %s1044
          %s1046 = sand.u32 %s110, 1
          %s1047 = smul.addr %s1046, 264
          %s1048 = scalar_lea.vmem [#allocation2], %s1047
          %1049 = dma.done %s1045, 4224
        $region44: #{tpu_custom_call.1} parent=39 // pred_fallthru
          _
      $region40: #{tpu_custom_call.1} parent=5 // pred_fallthru
        _
    $region6: #{tpu_custom_call.1} parent=1 // loop_footer
      %s16 = sadd.s32 1, %s12
    $region7: #{tpu_custom_call.1} parent=1 // loop_footer_branch
      %11 = sbr.rel target = $region3
    $region8: #{tpu_custom_call.1} parent=1 // loop_exit
      _
    %1050 = vsyncpa [#allocation3], 1
    %s1051 = scalar_lea.sflag [#allocation3], 1
    %1052 = vsyncpa %s1051, 1

</llo_original>
